<compile_context>
chip_gen: v6e
topology: v6e:2x2x1
jax: 0.10.0
libtpu: 0.0.40
codegen_flags: <defaults>
</compile_context>

<pallas_src>
from functools import partial

import jax
import jax.numpy as jnp
from jax.experimental import pallas as pl
from jax.experimental.pallas import tpu as pltpu


# ---------------------------------------------------------------------------
# Small helpers
# ---------------------------------------------------------------------------
def _round_up(n, m):
    return ((n + m - 1) // m) * m


def _cdiv(a, b):
    return -(-a // b)


def _sublane_align(dtype):
    return {4: 8, 2: 16, 1: 32}.get(jnp.dtype(dtype).itemsize, 8)


def _tile_bytes(rows, cols, dtype):
    it = jnp.dtype(dtype).itemsize
    return (_round_up(max(rows, 1), _sublane_align(dtype))
            * _round_up(max(cols, 1), 128) * it)


def _tpu_vmem_capacity_bytes():
    cap = 64 * 1024 * 1024                      # conservative default (v7x per-TC)
    try:
        cap = int(pltpu.get_tpu_info().vmem_capacity_bytes)
    except Exception:
        pass
    try:
        kind = str(getattr(jax.devices()[0], "device_kind", "")).lower()
        if ("v7" in kind) or ("7x" in kind):    # v7x: 64 MiB per TensorCore
            cap = min(cap, 64 * 1024 * 1024)
    except Exception:
        pass
    return max(32 * 1024 * 1024, min(cap, 128 * 1024 * 1024))


def _num_tensorcores_per_chip():
    try:
        dev = jax.devices()[0]
        nc = getattr(dev, "num_cores", None)
        if nc:
            return max(1, int(nc))
        kind = str(getattr(dev, "device_kind", "")).lower()
        if ("v4" in kind) or ("v5p" in kind) or ("v7" in kind) or ("7x" in kind):
            return 2
    except Exception:
        pass
    return 1


# ---------------------------------------------------------------------------
# Kernel
# ---------------------------------------------------------------------------
def _apm_kernel(*refs, thresh: bool, prob: bool, approx: bool, tiled: bool,
                ve_resident: bool, tv: int, v_dim: int, e_dim: int,
                mask_v: bool, cdt):
    idx = 0
    x_ref = refs[idx]; idx += 1
    ve_ref = refs[idx]; idx += 1
    w1_ref = refs[idx]; idx += 1
    b1_ref = refs[idx]; idx += 1
    w2_ref = refs[idx]; idx += 1
    b2_ref = refs[idx]; idx += 1
    s_ref = None
    if thresh:
        s_ref = refs[idx]; idx += 1
    out_ref = refs[idx]; idx += 1
    acc_ref = refs[idx] if tiled else None

    def _recip(v):
        # EUP approx reciprocal (free slot) on the bf16 fast path; exact on f32.
        return pl.reciprocal(v, approx=True) if approx else 1.0 / v

    def _load_x(k):
        # Stream x in its native dtype; mask lanes >= V (last, partial V tile),
        # then cast to the MXU compute dtype (free VPU filler under DMA).
        x = x_ref[...]
        if mask_v:
            col = jax.lax.broadcasted_iota(jnp.int32, x.shape, 1)
            x = jnp.where(k * tv + col < v_dim, x, jnp.zeros_like(x))
        return x.astype(cdt)

    def _epilogue(xe):
        # xe: (bt, E+1) f32; last column is the row-sum of x (ones-column trick).
        xsum = xe[:, e_dim:e_dim + 1]                                    # (bt, 1)
        embed = jnp.maximum(xe[:, :e_dim] * _recip(xsum), 0.0)          # (bt, E)

        cdt_w = w1_ref.dtype
        h = jnp.dot(embed.astype(cdt_w), w1_ref[...],
                    preferred_element_type=jnp.float32) + b1_ref[...]
        h = jnp.maximum(h, 0.0)                                          # (bt, H)
        logits = jnp.dot(h.astype(cdt_w), w2_ref[...],
                         preferred_element_type=jnp.float32) + b2_ref[...]  # (bt, Cpad)

        if thresh or prob:
            # Padded logit columns carry a -inf bias -> exp()==0 exactly, so the
            # softmax over the 128-wide lane-dense block equals softmax over C.
            m = jnp.max(logits, axis=-1, keepdims=True)
            e = jnp.exp(logits - m)
            p = e * _recip(jnp.sum(e, axis=-1, keepdims=True))

        if thresh:
            # tp[:, j] = sum_{j < k < C} p[:, k]  ==  (1 - cumsum(p, 1))[:, :-1]
            tp = jnp.dot(p, s_ref[...], preferred_element_type=jnp.float32)
            if prob:
                out_ref[...] = tp
            else:
                out_ref[...] = jnp.log(tp) - jnp.log1p(-tp)   # torch.special.logit
        elif prob:
            out_ref[...] = p
        else:
            out_ref[...] = logits

    if not tiled:
        # Single V tile: one pass, no accumulator scratch, no init/finalize.
        xe = jnp.dot(_load_x(0), ve_ref[...], preferred_element_type=jnp.float32)
        _epilogue(xe)
        return

    k = pl.program_id(1)

    @pl.when(k == 0)
    def _init():
        acc_ref[...] = jnp.zeros_like(acc_ref)

    if ve_resident:
        start = pl.multiple_of(k * tv, tv)
        ve_tile = ve_ref[pl.ds(start, tv), :]        # slice the resident block
    else:
        ve_tile = ve_ref[...]                        # per-k streamed tile
    acc_ref[...] += jnp.dot(_load_x(k), ve_tile,
                            preferred_element_type=jnp.float32)

    @pl.when(k == pl.num_programs(1) - 1)
    def _finalize():
        _epilogue(acc_ref[...])


# ---------------------------------------------------------------------------
# Wrapper
# ---------------------------------------------------------------------------
def shap_apm_deep_forward(x, vocab_embed, w1, b1, w2, b2,
                          *, thresh: bool = False, prob: bool = False,
                          compute_dtype=jnp.bfloat16, max_v_tile: int = 4096):
    x = jnp.asarray(x)                       # streamed as-is: no pad/astype copy
    vocab_embed = jnp.asarray(vocab_embed, jnp.float32)
    B, V = x.shape
    E = vocab_embed.shape[1]
    H = w1.shape[1]
    C = w2.shape[1]
    out_cols = (C - 1) if thresh else C

    cdt = jnp.dtype(compute_dtype)
    approx = (cdt == jnp.dtype(jnp.bfloat16))
    x_item = jnp.dtype(x.dtype).itemsize
    row_align = max(_sublane_align(x.dtype), 8)

    # --- generation-aware VMEM budget -------------------------------------
    vmem_cap = _tpu_vmem_capacity_bytes()
    vmem_limit = (vmem_cap * 3) // 4         # 96 MiB on 128-MiB parts, 48 on v7x
    budget = (vmem_cap * 5) // 8             # tile-sizing budget (headroom kept)

    # --- V (reduction) tiling ----------------------------------------------
    Ea = E + 1                               # ones column folded into vocab_embed
    Cpad = _round_up(C, 128)                 # lane-dense logits / output block
    tv = min(_round_up(V, 128), _round_up(max(int(max_v_tile), 128), 128))
    nk = _cdiv(V, tv)
    Vp = nk * tv
    tiled = nk > 1
    mask_v = (Vp != V)

    # vocab_embed(+ones) resident in VMEM for the whole grid when it fits.
    ve_resident = (not tiled) or (2 * _tile_bytes(Vp, Ea, cdt) <= budget // 3)
    ve_rows_blk = Vp if ve_resident else tv

    # --- fixed (batch-independent) VMEM footprint ---------------------------
    fixed = (2 * _tile_bytes(ve_rows_blk, Ea, cdt)
             + 2 * _tile_bytes(E, H, cdt)
             + 2 * _tile_bytes(1, H, jnp.float32)
             + 2 * _tile_bytes(H, Cpad, cdt)
             + 2 * _tile_bytes(1, Cpad, jnp.float32))
    if thresh:
        fixed += 2 * _tile_bytes(Cpad, Cpad, jnp.float32)

    # --- batch tile: largest bt fitting the budget (x counted at its native
    #     itemsize since it streams uncast) -----------------------------------
    per_row = (2 * tv * x_item                       # x tile, double-buffered
               + tv * cdt.itemsize                   # in-kernel cast copy of x tile
               + 2 * Cpad * 4                        # out tile, double-buffered
               + (_round_up(Ea, 128) * 4 if tiled else 0)   # f32 accumulator
               + 8 * 128 * 4)                        # f32 temporaries headroom
    bt = max(row_align, (budget - fixed) // per_row)
    bt = min(bt, 4096, _round_up(B, row_align))
    bt = max(row_align, (bt // row_align) * row_align)

    # --- multi-TensorCore chips: keep the "parallel" batch axis balanced ----
    cores = _num_tensorcores_per_chip()
    nb = _cdiv(B, bt)
    if cores > 1 and B > row_align * cores:
        nb_target = _round_up(max(nb, cores), cores)
        bt_new = max(row_align, _round_up(_cdiv(B, nb_target), row_align))
        bt = min(bt, bt_new)
        nb = _cdiv(B, bt)

    # --- small one-time parameter prep (never touches x) --------------------
    ve_aug = jnp.zeros((Vp, Ea), jnp.float32)
    ve_aug = ve_aug.at[:V, :E].set(vocab_embed)
    ve_aug = ve_aug.at[:V, E].set(1.0)               # ones column -> row-sum on MXU
    ve_aug = ve_aug.astype(cdt)

    w1_c = jnp.asarray(w1, jnp.float32).astype(cdt)
    b1_2d = jnp.asarray(b1, jnp.float32).reshape(1, H)

    pad_bias = (-jnp.inf) if (thresh or prob) else 0.0
    w2_p = jnp.zeros((H, Cpad), jnp.float32).at[:, :C].set(
        jnp.asarray(w2, jnp.float32)).astype(cdt)
    b2_p = jnp.full((1, Cpad), pad_bias, jnp.float32).at[0, :C].set(
        jnp.asarray(b2, jnp.float32))

    args = [x, ve_aug, w1_c, b1_2d, w2_p, b2_p]

    if tiled:
        if ve_resident:
            ve_spec = pl.BlockSpec((Vp, Ea), lambda i, k: (0, 0))
        else:
            ve_spec = pl.BlockSpec((tv, Ea), lambda i, k: (k, 0))
        in_specs = [
            pl.BlockSpec((bt, tv), lambda i, k: (i, k)),      # x tile
            ve_spec,                                          # vocab_embed(+ones)
            pl.BlockSpec((E, H), lambda i, k: (0, 0)),
            pl.BlockSpec((1, H), lambda i, k: (0, 0)),
            pl.BlockSpec((H, Cpad), lambda i, k: (0, 0)),
            pl.BlockSpec((1, Cpad), lambda i, k: (0, 0)),
        ]
        s_spec = pl.BlockSpec((Cpad, Cpad), lambda i, k: (0, 0))
        out_spec = pl.BlockSpec((bt, Cpad), lambda i, k: (i, 0))
        grid = (nb, nk)                                       # reduction axis last
        dims = ("parallel", "arbitrary")
        scratch = [pltpu.VMEM((bt, Ea), jnp.float32)]
    else:
        in_specs = [
            pl.BlockSpec((bt, tv), lambda i: (i, 0)),
            pl.BlockSpec((Vp, Ea), lambda i: (0, 0)),
            pl.BlockSpec((E, H), lambda i: (0, 0)),
            pl.BlockSpec((1, H), lambda i: (0, 0)),
            pl.BlockSpec((H, Cpad), lambda i: (0, 0)),
            pl.BlockSpec((1, Cpad), lambda i: (0, 0)),
        ]
        s_spec = pl.BlockSpec((Cpad, Cpad), lambda i: (0, 0))
        out_spec = pl.BlockSpec((bt, Cpad), lambda i: (i, 0))
        grid = (nb,)
        dims = ("parallel",)
        scratch = []

    if thresh:
        # Padded suffix-sum matrix: S[k, j] = 1 iff j < k < C and j < C-1
        kk = jnp.arange(Cpad)[:, None]
        jj = jnp.arange(Cpad)[None, :]
        S = ((kk > jj) & (kk < C) & (jj < (C - 1))).astype(jnp.float32)
        args.append(S)
        in_specs.append(s_spec)

    kernel = partial(_apm_kernel, thresh=thresh, prob=prob, approx=approx,
                     tiled=tiled, ve_resident=ve_resident, tv=tv, v_dim=V,
                     e_dim=E, mask_v=mask_v, cdt=cdt)

    out = pl.pallas_call(
        kernel,
        out_shape=jax.ShapeDtypeStruct((B, Cpad), jnp.float32),
        grid_spec=pltpu.PrefetchScalarGridSpec(
            num_scalar_prefetch=0,
            grid=grid,
            in_specs=in_specs,
            out_specs=out_spec,
            scratch_shapes=scratch,
        ),
        compiler_params=pltpu.CompilerParams(
            dimension_semantics=dims,
            vmem_limit_bytes=int(vmem_limit),
        ),
    )(*args)

    return out[:, :out_cols]


# ---------------------------------------------------------------------------
# Pure-JAX reference (mirrors the PyTorch module in f32)
# ---------------------------------------------------------------------------
def _reference(x, vocab_embed, w1, b1, w2, b2, *, thresh, prob):
    embed = jax.nn.relu((x @ vocab_embed) / jnp.sum(x, axis=1, keepdims=True))
    out = jax.nn.relu(embed @ w1 + b1) @ w2 + b2
    if thresh:
        p = jax.nn.softmax(out, axis=1)
        tp = (1.0 - jnp.cumsum(p, axis=1))[:, :-1]
        return tp if prob else (jnp.log(tp) - jnp.log1p(-tp))
    if prob:
        return jax.nn.softmax(out, axis=1)
    return out


if __name__ == "__main__":
    # Small shapes consistent with the module: x is a (B, vocab) bag-of-tokens matrix.
    B, V, E, H, C = 8, 128, 32, 32, 7

    key = jax.random.PRNGKey(0)
    k_x, k_ve, k_w1, k_b1, k_w2, k_b2, k_x2, k_ve2 = jax.random.split(key, 8)

    # x >= 0 (count-like), so x.sum(1) > 0 as in the intended usage.
    x = jax.random.uniform(k_x, (B, V), dtype=jnp.float32)
    vocab_embed = 0.1 * jax.random.normal(k_ve, (V, E), dtype=jnp.float32)
    w1 = 0.1 * jax.random.normal(k_w1, (E, H), dtype=jnp.float32)
    b1 = 0.1 * jax.random.normal(k_b1, (H,), dtype=jnp.float32)
    w2 = 0.1 * jax.random.normal(k_w2, (H, C), dtype=jnp.float32)
    b2 = 0.1 * jax.random.normal(k_b2, (C,), dtype=jnp.float32)

    cases = [(False, False), (False, True), (True, False), (True, True)]
    ok = True

    # Single-V-tile fast path: f32 (reference-grade) and bf16 (MXU fast path).
    for cdt, tol in [(jnp.float32, 2e-3), (jnp.bfloat16, 5e-2)]:
        for thresh, prob in cases:
            out = shap_apm_deep_forward(x, vocab_embed, w1, b1, w2, b2,
                                        thresh=thresh, prob=prob,
                                        compute_dtype=cdt)
            out = jax.block_until_ready(out)
            ref = _reference(x, vocab_embed, w1, b1, w2, b2,
                             thresh=thresh, prob=prob)
            if not bool(jnp.allclose(out, ref, atol=tol, rtol=tol)):
                ok = False
                err = float(jnp.max(jnp.abs(out - ref)))
                print(f"MISMATCH single dtype={jnp.dtype(cdt).name} "
                      f"thresh={thresh} prob={prob} max_abs_err={err:.3e}")

    # Tiled V-reduction path (forced via max_v_tile) with the resident
    # vocab_embed block sliced in-kernel.
    V2 = 256
    x2 = jax.random.uniform(k_x2, (B, V2), dtype=jnp.float32)
    ve2 = 0.1 * jax.random.normal(k_ve2, (V2, E), dtype=jnp.float32)
    for thresh, prob in cases:
        out = shap_apm_deep_forward(x2, ve2, w1, b1, w2, b2,
                                    thresh=thresh, prob=prob,
                                    compute_dtype=jnp.bfloat16,
                                    max_v_tile=128)          # force 2 V tiles
        out = jax.block_until_ready(out)
        ref = _reference(x2, ve2, w1, b1, w2, b2, thresh=thresh, prob=prob)
        if not bool(jnp.allclose(out, ref, atol=5e-2, rtol=5e-2)):
            ok = False
            err = float(jnp.max(jnp.abs(out - ref)))
            print(f"MISMATCH tiled thresh={thresh} prob={prob} "
                  f"max_abs_err={err:.3e}")

    if ok:
        print("KERNEL_OK")
</pallas_src>

<mosaic_0001>
module attributes {stable_mosaic.version = 11 : i64} {
  func.func @_apm_kernel(%arg0: i32, %arg1: memref<8x128xf32, #tpu.memory_space<vmem>>, %arg2: memref<128x33xf32, #tpu.memory_space<vmem>>, %arg3: memref<32x32xf32, #tpu.memory_space<vmem>>, %arg4: memref<1x32xf32, #tpu.memory_space<vmem>>, %arg5: memref<32x128xf32, #tpu.memory_space<vmem>>, %arg6: memref<1x128xf32, #tpu.memory_space<vmem>>, %arg7: memref<8x128xf32, #tpu.memory_space<vmem>>) attributes {dimension_semantics = [#tpu.dimension_semantics<parallel>], iteration_bounds = array<i64: 1>, scalar_prefetch = 0 : i64, scratch_operands = 0 : i64, tpu.core_type = #tpu.core_type<tc>, window_params = [{transform_indices = @transform_0, window_bounds = array<i64: 8, 128>}, {pipeline_mode = #tpu.pipeline_mode<synchronous>, transform_indices = @transform_1, window_bounds = array<i64: 128, 33>}, {pipeline_mode = #tpu.pipeline_mode<synchronous>, transform_indices = @transform_2, window_bounds = array<i64: 32, 32>}, {pipeline_mode = #tpu.pipeline_mode<synchronous>, transform_indices = @transform_3, window_bounds = array<i64: 1, 32>}, {pipeline_mode = #tpu.pipeline_mode<synchronous>, transform_indices = @transform_4, window_bounds = array<i64: 32, 128>}, {pipeline_mode = #tpu.pipeline_mode<synchronous>, transform_indices = @transform_5, window_bounds = array<i64: 1, 128>}, {transform_indices = @transform_6, window_bounds = array<i64: 8, 128>}]} {
    %c0 = arith.constant 0 : index
    %c0_0 = arith.constant 0 : index
    %0 = vector.load %arg1[%c0, %c0_0] : memref<8x128xf32, #tpu.memory_space<vmem>>, vector<8x128xf32>
    %c0_1 = arith.constant 0 : index
    %c0_2 = arith.constant 0 : index
    %1 = vector.load %arg2[%c0_1, %c0_2] : memref<128x33xf32, #tpu.memory_space<vmem>>, vector<128x33xf32>
    %cst = arith.constant dense<0.000000e+00> : vector<8x33xf32>
    %2 = tpu.matmul %0, %1, %cst {dimension_numbers = #tpu.dot_dimension_numbers<[1], [0], [0], [1], [0, 0, 1, 1], [], []>} : vector<8x128xf32>, vector<128x33xf32>, vector<8x33xf32> -> vector<8x33xf32>
    %3 = vector.extract_strided_slice %2 {offsets = [0, 32], sizes = [8, 1], strides = [1, 1]} : vector<8x33xf32> to vector<8x1xf32>
    %4 = vector.extract_strided_slice %2 {offsets = [0, 0], sizes = [8, 32], strides = [1, 1]} : vector<8x33xf32> to vector<8x32xf32>
    %cst_3 = arith.constant 1.000000e+00 : f32
    %5 = vector.broadcast %cst_3 : f32 to vector<8x1xf32>
    %6 = arith.divf %5, %3 : vector<8x1xf32>
    %7 = vector.broadcast %6 : vector<8x1xf32> to vector<8x32xf32>
    %8 = arith.mulf %4, %7 : vector<8x32xf32>
    %cst_4 = arith.constant 0.000000e+00 : f32
    %9 = vector.broadcast %cst_4 : f32 to vector<8x32xf32>
    %10 = arith.maximumf %8, %9 : vector<8x32xf32>
    %c0_5 = arith.constant 0 : index
    %c0_6 = arith.constant 0 : index
    %11 = vector.load %arg3[%c0_5, %c0_6] : memref<32x32xf32, #tpu.memory_space<vmem>>, vector<32x32xf32>
    %cst_7 = arith.constant dense<0.000000e+00> : vector<8x32xf32>
    %12 = tpu.matmul %10, %11, %cst_7 {dimension_numbers = #tpu.dot_dimension_numbers<[1], [0], [0], [1], [0, 0, 1, 1], [], []>} : vector<8x32xf32>, vector<32x32xf32>, vector<8x32xf32> -> vector<8x32xf32>
    %c0_8 = arith.constant 0 : index
    %c0_9 = arith.constant 0 : index
    %13 = vector.load %arg4[%c0_8, %c0_9] : memref<1x32xf32, #tpu.memory_space<vmem>>, vector<1x32xf32>
    %14 = vector.broadcast %13 : vector<1x32xf32> to vector<8x32xf32>
    %15 = arith.addf %12, %14 : vector<8x32xf32>
    %cst_10 = arith.constant 0.000000e+00 : f32
    %16 = vector.broadcast %cst_10 : f32 to vector<8x32xf32>
    %17 = arith.maximumf %15, %16 : vector<8x32xf32>
    %c0_11 = arith.constant 0 : index
    %c0_12 = arith.constant 0 : index
    %18 = vector.load %arg5[%c0_11, %c0_12] : memref<32x128xf32, #tpu.memory_space<vmem>>, vector<32x128xf32>
    %cst_13 = arith.constant dense<0.000000e+00> : vector<8x128xf32>
    %19 = tpu.matmul %17, %18, %cst_13 {dimension_numbers = #tpu.dot_dimension_numbers<[1], [0], [0], [1], [0, 0, 1, 1], [], []>} : vector<8x32xf32>, vector<32x128xf32>, vector<8x128xf32> -> vector<8x128xf32>
    %c0_14 = arith.constant 0 : index
    %c0_15 = arith.constant 0 : index
    %20 = vector.load %arg6[%c0_14, %c0_15] : memref<1x128xf32, #tpu.memory_space<vmem>>, vector<1x128xf32>
    %21 = vector.broadcast %20 : vector<1x128xf32> to vector<8x128xf32>
    %22 = arith.addf %19, %21 : vector<8x128xf32>
    %c0_16 = arith.constant 0 : index
    %c0_17 = arith.constant 0 : index
    %23 = vector.load %arg7[%c0_16, %c0_17] : memref<8x128xf32, #tpu.memory_space<vmem>>, vector<8x128xf32>
    tpu.vector_store %arg7[%c0_16, %c0_17], %22 {strides = array<i32>} : memref<8x128xf32, #tpu.memory_space<vmem>>, vector<8x128xf32>,
    return
  }
  func.func @transform_0(%arg0: i32) -> (i32, i32) {
    %c0_i32 = arith.constant 0 : i32
    %c0_i32_0 = arith.constant 0 : i32
    return %arg0, %c0_i32 : i32, i32
  }
  func.func @transform_1(%arg0: i32) -> (i32, i32) {
    %c0_i32 = arith.constant 0 : i32
    %c0_i32_0 = arith.constant 0 : i32
    %c0_i32_1 = arith.constant 0 : i32
    return %c0_i32, %c0_i32_0 : i32, i32
  }
  func.func @transform_2(%arg0: i32) -> (i32, i32) {
    %c0_i32 = arith.constant 0 : i32
    %c0_i32_0 = arith.constant 0 : i32
    %c0_i32_1 = arith.constant 0 : i32
    return %c0_i32, %c0_i32_0 : i32, i32
  }
  func.func @transform_3(%arg0: i32) -> (i32, i32) {
    %c0_i32 = arith.constant 0 : i32
    %c0_i32_0 = arith.constant 0 : i32
    %c0_i32_1 = arith.constant 0 : i32
    return %c0_i32, %c0_i32_0 : i32, i32
  }
  func.func @transform_4(%arg0: i32) -> (i32, i32) {
    %c0_i32 = arith.constant 0 : i32
    %c0_i32_0 = arith.constant 0 : i32
    %c0_i32_1 = arith.constant 0 : i32
    return %c0_i32, %c0_i32_0 : i32, i32
  }
  func.func @transform_5(%arg0: i32) -> (i32, i32) {
    %c0_i32 = arith.constant 0 : i32
    %c0_i32_0 = arith.constant 0 : i32
    %c0_i32_1 = arith.constant 0 : i32
    return %c0_i32, %c0_i32_0 : i32, i32
  }
  func.func @transform_6(%arg0: i32) -> (i32, i32) {
    %c0_i32 = arith.constant 0 : i32
    %c0_i32_0 = arith.constant 0 : i32
    return %arg0, %c0_i32 : i32, i32
  }
}

</mosaic_0001>

<llo_original>
// kernel: tpu_custom_call.1
$region0: #{tpu_custom_call.1}
  #allocation0 [shape = 'u32[]', space=smem, size = 0x4, offset = 0x4, fixed_abs, tag = 'smem constant byte address 0x4 - core index']
  #allocation1 [shape = 'u32[144,128]{1,0:T(1,128)}', space=vmem, size = 0x12000, scoped, tag = 'internal scratch']
  %s0 = inlined_call_operand.vmem [shape: f32[8,128], index: 0, kind: input, shape index: {}]
  %s1 = inlined_call_operand.vmem [shape: f32[128,33], index: 1, kind: input, shape index: {}]
  %s2 = inlined_call_operand.vmem [shape: f32[32,32], index: 2, kind: input, shape index: {}]
  %s3 = inlined_call_operand.vmem [shape: f32[1,32], index: 3, kind: input, shape index: {}]
  %s4 = inlined_call_operand.vmem [shape: f32[32,128], index: 4, kind: input, shape index: {}]
  %s5 = inlined_call_operand.vmem [shape: f32[1,128], index: 5, kind: input, shape index: {}]
  %s6 = inlined_call_operand.hbm [shape: f32[8,128], index: 6, kind: output, shape index: {}]
  %s7 = sld [smem:[#allocation0]]
  $region34: #{tpu_custom_call.1} parent=0
    _
  %s9 = ssub.s32 1, %s7
  %s10 = scalar_select 0, %s9, %s7
  $region1: #{tpu_custom_call.1} parent=0
    #allocation2 [shape = 'u8[4096]{0}', space=vmem, size = 0x1000, scoped, tag = 'output window, operand 0, single buffered']
    #allocation3 [shape = 's32[1]{0}', space=sflag, size = 0x4, scoped, tag = 'scoped memory for tpu_custom_call.1']
    %11 = vsyncpa [#allocation3], 0
    // Predicated region
    $region2: #{tpu_custom_call.1} parent=1 // pred_check
      _
    $region3: #{tpu_custom_call.1} parent=1 // pred_check_branch
      %13 = sbr.rel (0) target = $region5
    $region4: #{tpu_custom_call.1} parent=1 // pred_region
      _
    $region5: #{tpu_custom_call.1} parent=1 // pred_fallthru
      _
    // Predicated region
    $region6: #{tpu_custom_call.1} parent=1 // pred_check
      _
    $region7: #{tpu_custom_call.1} parent=1 // pred_check_branch
      %15 = sbr.rel (0) target = $region9
    $region8: #{tpu_custom_call.1} parent=1 // pred_region
      _
    $region9: #{tpu_custom_call.1} parent=1 // pred_fallthru
      _
    // Predicated region
    $region10: #{tpu_custom_call.1} parent=1 // pred_check
      _
    $region11: #{tpu_custom_call.1} parent=1 // pred_check_branch
      %17 = sbr.rel (0) target = $region13
    $region12: #{tpu_custom_call.1} parent=1 // pred_region
      _
    $region13: #{tpu_custom_call.1} parent=1 // pred_fallthru
      _
    // Predicated region
    $region14: #{tpu_custom_call.1} parent=1 // pred_check
      _
    $region15: #{tpu_custom_call.1} parent=1 // pred_check_branch
      %19 = sbr.rel (0) target = $region17
    $region16: #{tpu_custom_call.1} parent=1 // pred_region
      _
    $region17: #{tpu_custom_call.1} parent=1 // pred_fallthru
      _
    // Predicated region
    $region18: #{tpu_custom_call.1} parent=1 // pred_check
      _
    $region19: #{tpu_custom_call.1} parent=1 // pred_check_branch
      %21 = sbr.rel (0) target = $region21
    $region20: #{tpu_custom_call.1} parent=1 // pred_region
      _
    $region21: #{tpu_custom_call.1} parent=1 // pred_fallthru
      _
    // Predicated region
    $region22: #{tpu_custom_call.1} parent=1 // pred_check
      _
    $region23: #{tpu_custom_call.1} parent=1 // pred_check_branch
      %23 = sbr.rel (0) target = $region25
    $region24: #{tpu_custom_call.1} parent=1 // pred_region
      _
    $region25: #{tpu_custom_call.1} parent=1 // pred_fallthru
      _
    %v24 = vld [vmem:[%s0] sm:$0xff]
    %v25 = vld [vmem:[%s1] sm:$0xff]
    %v26 = vld [vmem:[%s1 + $0x8] sm:$0xff]
    %v27 = vld [vmem:[%s1 + $0x10] sm:$0xff]
    %v28 = vld [vmem:[%s1 + $0x18] sm:$0xff]
    %v29 = vld [vmem:[%s1 + $0x20] sm:$0xff]
    %v30 = vld [vmem:[%s1 + $0x28] sm:$0xff]
    %v31 = vld [vmem:[%s1 + $0x30] sm:$0xff]
    %v32 = vld [vmem:[%s1 + $0x38] sm:$0xff]
    %v33 = vld [vmem:[%s1 + $0x40] sm:$0xff]
    %v34 = vld [vmem:[%s1 + $0x48] sm:$0xff]
    %v35 = vld [vmem:[%s1 + $0x50] sm:$0xff]
    %v36 = vld [vmem:[%s1 + $0x58] sm:$0xff]
    %v37 = vld [vmem:[%s1 + $0x60] sm:$0xff]
    %v38 = vld [vmem:[%s1 + $0x68] sm:$0xff]
    %v39 = vld [vmem:[%s1 + $0x70] sm:$0xff]
    %v40 = vld [vmem:[%s1 + $0x78] sm:$0xff]
    %41 = vmatprep.subr.mxu0 0.0
    %42 = vmatpush1.msra.mxu0 %v40
    %43 = vmatprep.subr.mxu0 0.0
    %44 = vmatpush1.msra.mxu0 %v39
    %45 = vmatprep.subr.mxu0 0.0
    %46 = vmatpush1.msra.mxu0 %v38
    %47 = vmatprep.subr.mxu0 0.0
    %48 = vmatpush1.msra.mxu0 %v37
    %49 = vmatprep.subr.mxu0 0.0
    %50 = vmatpush1.msra.mxu0 %v36
    %51 = vmatprep.subr.mxu0 0.0
    %52 = vmatpush1.msra.mxu0 %v35
    %53 = vmatprep.subr.mxu0 0.0
    %54 = vmatpush1.msra.mxu0 %v34
    %55 = vmatprep.subr.mxu0 0.0
    %56 = vmatpush1.msra.mxu0 %v33
    %57 = vmatprep.subr.mxu0 0.0
    %58 = vmatpush1.msra.mxu0 %v32
    %59 = vmatprep.subr.mxu0 0.0
    %60 = vmatpush1.msra.mxu0 %v31
    %61 = vmatprep.subr.mxu0 0.0
    %62 = vmatpush1.msra.mxu0 %v30
    %63 = vmatprep.subr.mxu0 0.0
    %64 = vmatpush1.msra.mxu0 %v29
    %65 = vmatprep.subr.mxu0 0.0
    %66 = vmatpush1.msra.mxu0 %v28
    %67 = vmatprep.subr.mxu0 0.0
    %68 = vmatpush1.msra.mxu0 %v27
    %69 = vmatprep.subr.mxu0 0.0
    %70 = vmatpush1.msra.mxu0 %v26
    %71 = vmatprep.subr.mxu0 0.0
    %72 = vmatpush1.msra.mxu0 %v25
    %73 = vmatprep.subr.mxu0 0.0
    %74 = vmatpush2.msra.mxu0 0.0
    %75 = vmatprep.subr.mxu0 0.0
    %76 = vmatpush2.msra.mxu0 0.0
    %77 = vmatprep.subr.mxu0 0.0
    %78 = vmatpush2.msra.mxu0 0.0
    %79 = vmatprep.subr.mxu0 0.0
    %80 = vmatpush2.msra.mxu0 0.0
    %81 = vmatprep.subr.mxu0 0.0
    %82 = vmatpush2.msra.mxu0 0.0
    %83 = vmatprep.subr.mxu0 0.0
    %84 = vmatpush2.msra.mxu0 0.0
    %85 = vmatprep.subr.mxu0 0.0
    %86 = vmatpush2.msra.mxu0 0.0
    %87 = vmatprep.subr.mxu0 0.0
    %88 = vmatpush2.msra.mxu0 0.0
    %89 = vmatprep.subr.mxu0 0.0
    %90 = vmatpush2.msra.mxu0 0.0
    %91 = vmatprep.subr.mxu0 0.0
    %92 = vmatpush2.msra.mxu0 0.0
    %93 = vmatprep.subr.mxu0 0.0
    %94 = vmatpush2.msra.mxu0 0.0
    %95 = vmatprep.subr.mxu0 0.0
    %96 = vmatpush2.msra.mxu0 0.0
    %97 = vmatprep.subr.mxu0 0.0
    %98 = vmatpush2.msra.mxu0 0.0
    %99 = vmatprep.subr.mxu0 0.0
    %100 = vmatpush2.msra.mxu0 0.0
    %101 = vmatprep.subr.mxu0 0.0
    %102 = vmatpush2.msra.mxu0 0.0
    %103 = vmatprep.subr.mxu0 0.0
    %104 = vmatpush2.msra.mxu0 0.0
    %105 = vmatprep.mubr.f32.mxu0 0.0
    %106 = vmatmul.mubr.f32.gmra.mxu0 %v24
    %v107 = vpop.f32.mrf.mxu0
    %v108 = vadd.f32 0.0, %v107
    %v109 = vpop.f32.mrf.mxu0
    %110 = vdwg.mxu0
    %v111 = vrcp.pop %v108
    %v112 = vmul.f32 1.0, %v111
    %114 = vset.pattern.permute.xlu0 32
    %115 = vperm.xlu0 %114, %v112
    %v116 = vpop.permute.xlu0 %115
    %v118 = vmul.f32 %v108, %v116
    %v119 = vmax.f32 %v118, 0.0
    %v120 = vld [vmem:[%s2] sm:$0xff]
    %v121 = vld [vmem:[%s2 + $0x8] sm:$0xff]
    %v122 = vld [vmem:[%s2 + $0x10] sm:$0xff]
    %v123 = vld [vmem:[%s2 + $0x18] sm:$0xff]
    %v124 = vld [vmem:[%s3] sm:$0x1]
    %v126 = vlaneseq
    %v127 = vshrl.u32 %v126, 7
    %v128 = vsub.s32 0, %v127
    %v129 = vrot.slane %v124, %v128
    %vm131 = vcmask 261120
    %v133 = vsel %vm131, %v119, 0
    %135 = vmatprep.subr.mxu0 0.0
    %136 = vmatpush1.msra.mxu0 0.0
    %137 = vmatprep.subr.mxu0 0.0
    %138 = vmatpush1.msra.mxu0 0.0
    %139 = vmatprep.subr.mxu0 0.0
    %140 = vmatpush1.msra.mxu0 0.0
    %141 = vmatprep.subr.mxu0 0.0
    %142 = vmatpush1.msra.mxu0 0.0
    %143 = vmatprep.subr.mxu0 0.0
    %144 = vmatpush1.msra.mxu0 0.0
    %145 = vmatprep.subr.mxu0 0.0
    %146 = vmatpush1.msra.mxu0 0.0
    %147 = vmatprep.subr.mxu0 0.0
    %148 = vmatpush1.msra.mxu0 0.0
    %149 = vmatprep.subr.mxu0 0.0
    %150 = vmatpush1.msra.mxu0 0.0
    %151 = vmatprep.subr.mxu0 0.0
    %152 = vmatpush1.msra.mxu0 0.0
    %153 = vmatprep.subr.mxu0 0.0
    %154 = vmatpush1.msra.mxu0 0.0
    %155 = vmatprep.subr.mxu0 0.0
    %156 = vmatpush1.msra.mxu0 0.0
    %157 = vmatprep.subr.mxu0 0.0
    %158 = vmatpush1.msra.mxu0 0.0
    %159 = vmatprep.subr.mxu0 0.0
    %160 = vmatpush1.msra.mxu0 %v123
    %161 = vmatprep.subr.mxu0 0.0
    %162 = vmatpush1.msra.mxu0 %v122
    %163 = vmatprep.subr.mxu0 0.0
    %164 = vmatpush1.msra.mxu0 %v121
    %165 = vmatprep.subr.mxu0 0.0
    %166 = vmatpush1.msra.mxu0 %v120
    %167 = vmatprep.subr.mxu0 0.0
    %168 = vmatpush2.msra.mxu0 0.0
    %169 = vmatprep.subr.mxu0 0.0
    %170 = vmatpush2.msra.mxu0 0.0
    %171 = vmatprep.subr.mxu0 0.0
    %172 = vmatpush2.msra.mxu0 0.0
    %173 = vmatprep.subr.mxu0 0.0
    %174 = vmatpush2.msra.mxu0 0.0
    %175 = vmatprep.subr.mxu0 0.0
    %176 = vmatpush2.msra.mxu0 0.0
    %177 = vmatprep.subr.mxu0 0.0
    %178 = vmatpush2.msra.mxu0 0.0
    %179 = vmatprep.subr.mxu0 0.0
    %180 = vmatpush2.msra.mxu0 0.0
    %181 = vmatprep.subr.mxu0 0.0
    %182 = vmatpush2.msra.mxu0 0.0
    %183 = vmatprep.subr.mxu0 0.0
    %184 = vmatpush2.msra.mxu0 0.0
    %185 = vmatprep.subr.mxu0 0.0
    %186 = vmatpush2.msra.mxu0 0.0
    %187 = vmatprep.subr.mxu0 0.0
    %188 = vmatpush2.msra.mxu0 0.0
    %189 = vmatprep.subr.mxu0 0.0
    %190 = vmatpush2.msra.mxu0 0.0
    %191 = vmatprep.subr.mxu0 0.0
    %192 = vmatpush2.msra.mxu0 0.0
    %193 = vmatprep.subr.mxu0 0.0
    %194 = vmatpush2.msra.mxu0 0.0
    %195 = vmatprep.subr.mxu0 0.0
    %196 = vmatpush2.msra.mxu0 0.0
    %197 = vmatprep.subr.mxu0 0.0
    %198 = vmatpush2.msra.mxu0 0.0
    %199 = vmatprep.mubr.f32.mxu0 0.0
    %200 = vmatmul.mubr.f32.gmra.mxu0 %v133
    %v201 = vpop.f32.mrf.mxu0
    %v202 = vadd.f32 %v129, %v201
    %v203 = vpop.f32.mrf.mxu0
    %204 = vdwg.mxu0
    %v205 = vmax.f32 %v202, 0.0
    %v206 = vld [vmem:[%s4] sm:$0xff]
    %v207 = vld [vmem:[%s4 + $0x8] sm:$0xff]
    %v208 = vld [vmem:[%s4 + $0x10] sm:$0xff]
    %v209 = vld [vmem:[%s4 + $0x18] sm:$0xff]
    %v210 = vld [vmem:[%s5] sm:$0x1]
    %v212 = vlaneseq
    %v213 = vshrl.u32 %v212, 7
    %v214 = vsub.s32 0, %v213
    %v215 = vrot.slane %v210, %v214
    %v218 = vsel %vm131, %v205, 0
    %220 = vmatprep.subr.mxu0 0.0
    %221 = vmatpush1.msra.mxu0 0.0
    %222 = vmatprep.subr.mxu0 0.0
    %223 = vmatpush1.msra.mxu0 0.0
    %224 = vmatprep.subr.mxu0 0.0
    %225 = vmatpush1.msra.mxu0 0.0
    %226 = vmatprep.subr.mxu0 0.0
    %227 = vmatpush1.msra.mxu0 0.0
    %228 = vmatprep.subr.mxu0 0.0
    %229 = vmatpush1.msra.mxu0 0.0
    %230 = vmatprep.subr.mxu0 0.0
    %231 = vmatpush1.msra.mxu0 0.0
    %232 = vmatprep.subr.mxu0 0.0
    %233 = vmatpush1.msra.mxu0 0.0
    %234 = vmatprep.subr.mxu0 0.0
    %235 = vmatpush1.msra.mxu0 0.0
    %236 = vmatprep.subr.mxu0 0.0
    %237 = vmatpush1.msra.mxu0 0.0
    %238 = vmatprep.subr.mxu0 0.0
    %239 = vmatpush1.msra.mxu0 0.0
    %240 = vmatprep.subr.mxu0 0.0
    %241 = vmatpush1.msra.mxu0 0.0
    %242 = vmatprep.subr.mxu0 0.0
    %243 = vmatpush1.msra.mxu0 0.0
    %244 = vmatprep.subr.mxu0 0.0
    %245 = vmatpush1.msra.mxu0 %v209
    %246 = vmatprep.subr.mxu0 0.0
    %247 = vmatpush1.msra.mxu0 %v208
    %248 = vmatprep.subr.mxu0 0.0
    %249 = vmatpush1.msra.mxu0 %v207
    %250 = vmatprep.subr.mxu0 0.0
    %251 = vmatpush1.msra.mxu0 %v206
    %252 = vmatprep.subr.mxu0 0.0
    %253 = vmatpush2.msra.mxu0 0.0
    %254 = vmatprep.subr.mxu0 0.0
    %255 = vmatpush2.msra.mxu0 0.0
    %256 = vmatprep.subr.mxu0 0.0
    %257 = vmatpush2.msra.mxu0 0.0
    %258 = vmatprep.subr.mxu0 0.0
    %259 = vmatpush2.msra.mxu0 0.0
    %260 = vmatprep.subr.mxu0 0.0
    %261 = vmatpush2.msra.mxu0 0.0
    %262 = vmatprep.subr.mxu0 0.0
    %263 = vmatpush2.msra.mxu0 0.0
    %264 = vmatprep.subr.mxu0 0.0
    %265 = vmatpush2.msra.mxu0 0.0
    %266 = vmatprep.subr.mxu0 0.0
    %267 = vmatpush2.msra.mxu0 0.0
    %268 = vmatprep.subr.mxu0 0.0
    %269 = vmatpush2.msra.mxu0 0.0
    %270 = vmatprep.subr.mxu0 0.0
    %271 = vmatpush2.msra.mxu0 0.0
    %272 = vmatprep.subr.mxu0 0.0
    %273 = vmatpush2.msra.mxu0 0.0
    %274 = vmatprep.subr.mxu0 0.0
    %275 = vmatpush2.msra.mxu0 0.0
    %276 = vmatprep.subr.mxu0 0.0
    %277 = vmatpush2.msra.mxu0 0.0
    %278 = vmatprep.subr.mxu0 0.0
    %279 = vmatpush2.msra.mxu0 0.0
    %280 = vmatprep.subr.mxu0 0.0
    %281 = vmatpush2.msra.mxu0 0.0
    %282 = vmatprep.subr.mxu0 0.0
    %283 = vmatpush2.msra.mxu0 0.0
    %284 = vmatprep.mubr.f32.mxu0 0.0
    %285 = vmatmul.mubr.f32.gmra.mxu0 %v218
    %v286 = vpop.f32.mrf.mxu0
    %v287 = vadd.f32 %v215, %v286
    %v288 = vpop.f32.mrf.mxu0
    %289 = vdwg.mxu0
    %290 = vst [vmem:[#allocation2] sm:$0xff] %v287
    // Predicated region
    $region26: #{tpu_custom_call.1} parent=1 // pred_check
      _
    $region27: #{tpu_custom_call.1} parent=1 // pred_check_branch
      %292 = sbr.rel (0) target = $region29
    $region28: #{tpu_custom_call.1} parent=1 // pred_region
      %s294 = ssub.s32 128, 128
      %295 = vsyncadd [#allocation3], %s294
      %s297 = sshll.u32 [#allocation2], 4
      %s298 = int_to_ptr.vmem [resolvable:$true] %s297
      %300 = dma.vmem_to_hbm [thread:$0]  %s298, 128, %s6, [#allocation3]
    $region29: #{tpu_custom_call.1} parent=1 // pred_fallthru
      _
    // Predicated region
    $region30: #{tpu_custom_call.1} parent=1 // pred_check
      _
    $region31: #{tpu_custom_call.1} parent=1 // pred_check_branch
      %302 = sbr.rel (0) target = $region33
    $region32: #{tpu_custom_call.1} parent=1 // pred_region
      %303 = dma.done [#allocation3], 128
    $region33: #{tpu_custom_call.1} parent=1 // pred_fallthru
      _
    %304 = vsyncpa [#allocation3], 1

</llo_original>
